<compile_context>
chip_gen: v6e
topology: v6e:2x2x1
jax: 0.10.0
libtpu: 0.0.40
codegen_flags: <defaults>
</compile_context>

<pallas_src>
import functools

import jax
import jax.numpy as jnp
from jax.experimental import pallas as pl
from jax.experimental.pallas import tpu as pltpu

LANES = 128


def _round_up(v, m):
    return ((v + m - 1) // m) * m


def _pick_group_block(num_groups, target=8):
    """Packed groups per grid step.

    Big enough to amortize the ~0.35us/step grid overhead, small enough that the
    2x-buffered blocks stay tiny in VMEM on every TPU generation, and (when
    there are >= 2 groups) leaves >= 2 grid steps so the 'parallel' batch axis
    can feed both v7x TensorCores.
    """
    if num_groups <= 1:
        return 1
    return min(target, max(1, num_groups // 2))


def _conv_kernel(w_ref, b_ref, x_ref, o_ref, *, TG, C, K, R, R_OUT):
    # w_ref: SMEM (C*K*K,) f32   flattened weights, row-major (c, ki, kj)
    # b_ref: SMEM (1,)     f32   bias
    # x_ref: VMEM (TG, C, R, 128) f32  lane-packed images (PACK per 128-lane row)
    # o_ref: VMEM (TG, R_OUT, 128) f32 lane-packed, row-padded output
    bias = b_ref[0]
    # Hoist every scalar weight read out of the vector loop.
    wts = [w_ref[i] for i in range(C * K * K)]

    for g in range(TG):
        # One lane-dense accumulator per kj shift; the lane shift is deferred to
        # the end so only (K-1) XLU lane-rolls are needed per packed group.
        accs = [None] * K
        for c in range(C):
            slab = x_ref[g, c]                          # (R, 128) aligned full-lane load
            for ki in range(K):
                # rows[i, :] = slab[i + ki, :] for the rows we keep (i < OUT);
                # the wrapped rows only feed output rows >= OUT (discarded).
                rows = slab if ki == 0 else pltpu.roll(slab, R - ki, axis=0)
                for kj in range(K):
                    t = rows * wts[(c * K + ki) * K + kj]
                    accs[kj] = t if accs[kj] is None else accs[kj] + t
        out = accs[0] + bias                            # bias folded into the combine
        for kj in range(1, K):
            # left-shift by kj lanes: rolled[:, j] = accs[kj][:, j + kj]
            out = out + pltpu.roll(accs[kj], LANES - kj, axis=1)
        o_ref[g] = out[:R_OUT].astype(o_ref.dtype)


def convolution_forward(x, weight, bias, *, group_block=None):
    """x: (B, C, H, H) f32; weight: (C, K, K) f32; bias: (1,) f32 -> (B, OUT, OUT) f32."""
    B, C, H, W = x.shape
    Cw, K, K2 = weight.shape
    assert Cw == C and K == K2, "input channel size mismatch with accepted num of channels"
    assert W == H, "module assumes square inputs"
    OUT = H - K + 1
    # TODO(synk): LeNet-scale assumption; spatial width must fit one lane tile.
    assert W <= LANES, "kernel assumes spatial width <= 128 lanes"

    PACK = LANES // W                       # images packed side-by-side per 128-lane row
    R = _round_up(H, 8)                     # sublane-aligned rows (ki handled by rolls, no +K-1 pad)
    R_OUT = _round_up(OUT, 8)
    assert R_OUT <= R

    G = pl.cdiv(B, PACK)                    # number of packed groups
    TG = group_block if group_block is not None else _pick_group_block(G)
    G_PAD = _round_up(G, TG)
    B_PAD = G_PAD * PACK

    xf = x.astype(jnp.float32)
    # Lane-pack PACK images per 128-lane row: (B,C,H,W) -> (G_PAD, C, R, PACK*W[->128]).
    # Only batch / sublane-alignment / residual-lane padding -- no (H+K-1)-row slab.
    xp = jnp.pad(xf, ((0, B_PAD - B), (0, 0), (0, R - H), (0, 0)))
    xp = xp.reshape(G_PAD, PACK, C, R, W).transpose(0, 2, 3, 1, 4).reshape(G_PAD, C, R, PACK * W)
    if PACK * W < LANES:
        xp = jnp.pad(xp, ((0, 0), (0, 0), (0, 0), (0, LANES - PACK * W)))

    w_flat = weight.reshape(-1).astype(jnp.float32)
    b_flat = bias.reshape(-1).astype(jnp.float32)

    kernel = functools.partial(_conv_kernel, TG=TG, C=C, K=K, R=R, R_OUT=R_OUT)

    grid_spec = pltpu.PrefetchScalarGridSpec(
        num_scalar_prefetch=0,
        grid=(G_PAD // TG,),                                              # batch groups on the grid
        in_specs=[
            pl.BlockSpec(memory_space=pltpu.MemorySpace.SMEM),            # flat weights
            pl.BlockSpec(memory_space=pltpu.MemorySpace.SMEM),            # bias
            pl.BlockSpec((TG, C, R, LANES), lambda i: (i, 0, 0, 0)),      # packed image block
        ],
        out_specs=pl.BlockSpec((TG, R_OUT, LANES), lambda i: (i, 0, 0)),
    )

    out_packed = pl.pallas_call(
        kernel,
        out_shape=jax.ShapeDtypeStruct((G_PAD, R_OUT, LANES), jnp.float32),
        grid_spec=grid_spec,
        compiler_params=pltpu.CompilerParams(
            dimension_semantics=("parallel",)),                           # batch-parallel (v7x 2 TCs)
    )(w_flat, b_flat, xp)

    # Unpack lanes back to images: lanes [p*W, p*W+OUT) of group g -> image g*PACK + p.
    out_packed = out_packed[:, :, : PACK * W].reshape(G_PAD, R_OUT, PACK, W)
    out_packed = out_packed.transpose(0, 2, 1, 3).reshape(B_PAD, R_OUT, W)
    return out_packed[:B, :OUT, :OUT]


def _reference(x, weight, bias):
    # Pure-JAX reference replicating the PyTorch loop semantics.
    B, C, H, W = x.shape
    K = weight.shape[-1]
    OUT = H - K + 1
    out = jnp.zeros((B, OUT, OUT), jnp.float32)
    for ki in range(K):
        for kj in range(K):
            patch = x[:, :, ki:ki + OUT, kj:kj + OUT]              # (B, C, OUT, OUT)
            out = out + jnp.sum(patch * weight[None, :, ki:ki + 1, kj:kj + 1], axis=1)
    return out + bias.reshape(())


if __name__ == "__main__":
    key = jax.random.PRNGKey(0)

    B, C, H, K = 2, 4, 16, 5   # -> output (2, 12, 12)
    kx, kw = jax.random.split(key)
    x = jax.random.normal(kx, (B, C, H, H), dtype=jnp.float32)

    # Deterministic params, matching the module's __init__: weight = ones, bias = zeros.
    weight = jnp.ones((C, K, K), dtype=jnp.float32)
    bias = jnp.zeros((1,), dtype=jnp.float32)

    out = jax.block_until_ready(convolution_forward(x, weight, bias))
    ref = _reference(x, weight, bias)
    assert out.shape == (B, H - K + 1, H - K + 1)
    assert jnp.allclose(out, ref, atol=1e-4, rtol=1e-4), "mismatch vs reference (init params)"

    # Extra check with non-trivial weights / bias to exercise every shifted tap.
    weight2 = jax.random.normal(kw, (C, K, K), dtype=jnp.float32)
    bias2 = jnp.array([0.37], dtype=jnp.float32)
    out2 = jax.block_until_ready(convolution_forward(x, weight2, bias2))
    ref2 = _reference(x, weight2, bias2)
    assert jnp.allclose(out2, ref2, atol=1e-4, rtol=1e-4), "mismatch vs reference (random params)"

    print("KERNEL_OK")
</pallas_src>

<mosaic_0001>
module attributes {stable_mosaic.version = 11 : i64} {
  func.func @_conv_kernel(%arg0: i32, %arg1: memref<100xf32, #tpu.memory_space<smem>>, %arg2: memref<1xf32, #tpu.memory_space<smem>>, %arg3: memref<1x4x16x128xf32, #tpu.memory_space<vmem>>, %arg4: memref<1x16x128xf32, #tpu.memory_space<vmem>>) attributes {dimension_semantics = [#tpu.dimension_semantics<parallel>], iteration_bounds = array<i64: 1>, scalar_prefetch = 0 : i64, scratch_operands = 0 : i64, tpu.core_type = #tpu.core_type<tc>, window_params = [{transform_indices = @transform_0, window_bounds = array<i64: 100>}, {transform_indices = @transform_1, window_bounds = array<i64: 1>}, {transform_indices = @transform_2, window_bounds = array<i64: 1, 4, 16, 128>}, {transform_indices = @transform_3, window_bounds = array<i64: 1, 16, 128>}]} {
    %c0 = arith.constant 0 : index
    %0 = memref.load %arg2[%c0] : memref<1xf32, #tpu.memory_space<smem>>
    %c0_0 = arith.constant 0 : index
    %1 = memref.load %arg1[%c0_0] : memref<100xf32, #tpu.memory_space<smem>>
    %c1 = arith.constant 1 : index
    %2 = memref.load %arg1[%c1] : memref<100xf32, #tpu.memory_space<smem>>
    %c2 = arith.constant 2 : index
    %3 = memref.load %arg1[%c2] : memref<100xf32, #tpu.memory_space<smem>>
    %c3 = arith.constant 3 : index
    %4 = memref.load %arg1[%c3] : memref<100xf32, #tpu.memory_space<smem>>
    %c4 = arith.constant 4 : index
    %5 = memref.load %arg1[%c4] : memref<100xf32, #tpu.memory_space<smem>>
    %c5 = arith.constant 5 : index
    %6 = memref.load %arg1[%c5] : memref<100xf32, #tpu.memory_space<smem>>
    %c6 = arith.constant 6 : index
    %7 = memref.load %arg1[%c6] : memref<100xf32, #tpu.memory_space<smem>>
    %c7 = arith.constant 7 : index
    %8 = memref.load %arg1[%c7] : memref<100xf32, #tpu.memory_space<smem>>
    %c8 = arith.constant 8 : index
    %9 = memref.load %arg1[%c8] : memref<100xf32, #tpu.memory_space<smem>>
    %c9 = arith.constant 9 : index
    %10 = memref.load %arg1[%c9] : memref<100xf32, #tpu.memory_space<smem>>
    %c10 = arith.constant 10 : index
    %11 = memref.load %arg1[%c10] : memref<100xf32, #tpu.memory_space<smem>>
    %c11 = arith.constant 11 : index
    %12 = memref.load %arg1[%c11] : memref<100xf32, #tpu.memory_space<smem>>
    %c12 = arith.constant 12 : index
    %13 = memref.load %arg1[%c12] : memref<100xf32, #tpu.memory_space<smem>>
    %c13 = arith.constant 13 : index
    %14 = memref.load %arg1[%c13] : memref<100xf32, #tpu.memory_space<smem>>
    %c14 = arith.constant 14 : index
    %15 = memref.load %arg1[%c14] : memref<100xf32, #tpu.memory_space<smem>>
    %c15 = arith.constant 15 : index
    %16 = memref.load %arg1[%c15] : memref<100xf32, #tpu.memory_space<smem>>
    %c16 = arith.constant 16 : index
    %17 = memref.load %arg1[%c16] : memref<100xf32, #tpu.memory_space<smem>>
    %c17 = arith.constant 17 : index
    %18 = memref.load %arg1[%c17] : memref<100xf32, #tpu.memory_space<smem>>
    %c18 = arith.constant 18 : index
    %19 = memref.load %arg1[%c18] : memref<100xf32, #tpu.memory_space<smem>>
    %c19 = arith.constant 19 : index
    %20 = memref.load %arg1[%c19] : memref<100xf32, #tpu.memory_space<smem>>
    %c20 = arith.constant 20 : index
    %21 = memref.load %arg1[%c20] : memref<100xf32, #tpu.memory_space<smem>>
    %c21 = arith.constant 21 : index
    %22 = memref.load %arg1[%c21] : memref<100xf32, #tpu.memory_space<smem>>
    %c22 = arith.constant 22 : index
    %23 = memref.load %arg1[%c22] : memref<100xf32, #tpu.memory_space<smem>>
    %c23 = arith.constant 23 : index
    %24 = memref.load %arg1[%c23] : memref<100xf32, #tpu.memory_space<smem>>
    %c24 = arith.constant 24 : index
    %25 = memref.load %arg1[%c24] : memref<100xf32, #tpu.memory_space<smem>>
    %c25 = arith.constant 25 : index
    %26 = memref.load %arg1[%c25] : memref<100xf32, #tpu.memory_space<smem>>
    %c26 = arith.constant 26 : index
    %27 = memref.load %arg1[%c26] : memref<100xf32, #tpu.memory_space<smem>>
    %c27 = arith.constant 27 : index
    %28 = memref.load %arg1[%c27] : memref<100xf32, #tpu.memory_space<smem>>
    %c28 = arith.constant 28 : index
    %29 = memref.load %arg1[%c28] : memref<100xf32, #tpu.memory_space<smem>>
    %c29 = arith.constant 29 : index
    %30 = memref.load %arg1[%c29] : memref<100xf32, #tpu.memory_space<smem>>
    %c30 = arith.constant 30 : index
    %31 = memref.load %arg1[%c30] : memref<100xf32, #tpu.memory_space<smem>>
    %c31 = arith.constant 31 : index
    %32 = memref.load %arg1[%c31] : memref<100xf32, #tpu.memory_space<smem>>
    %c32 = arith.constant 32 : index
    %33 = memref.load %arg1[%c32] : memref<100xf32, #tpu.memory_space<smem>>
    %c33 = arith.constant 33 : index
    %34 = memref.load %arg1[%c33] : memref<100xf32, #tpu.memory_space<smem>>
    %c34 = arith.constant 34 : index
    %35 = memref.load %arg1[%c34] : memref<100xf32, #tpu.memory_space<smem>>
    %c35 = arith.constant 35 : index
    %36 = memref.load %arg1[%c35] : memref<100xf32, #tpu.memory_space<smem>>
    %c36 = arith.constant 36 : index
    %37 = memref.load %arg1[%c36] : memref<100xf32, #tpu.memory_space<smem>>
    %c37 = arith.constant 37 : index
    %38 = memref.load %arg1[%c37] : memref<100xf32, #tpu.memory_space<smem>>
    %c38 = arith.constant 38 : index
    %39 = memref.load %arg1[%c38] : memref<100xf32, #tpu.memory_space<smem>>
    %c39 = arith.constant 39 : index
    %40 = memref.load %arg1[%c39] : memref<100xf32, #tpu.memory_space<smem>>
    %c40 = arith.constant 40 : index
    %41 = memref.load %arg1[%c40] : memref<100xf32, #tpu.memory_space<smem>>
    %c41 = arith.constant 41 : index
    %42 = memref.load %arg1[%c41] : memref<100xf32, #tpu.memory_space<smem>>
    %c42 = arith.constant 42 : index
    %43 = memref.load %arg1[%c42] : memref<100xf32, #tpu.memory_space<smem>>
    %c43 = arith.constant 43 : index
    %44 = memref.load %arg1[%c43] : memref<100xf32, #tpu.memory_space<smem>>
    %c44 = arith.constant 44 : index
    %45 = memref.load %arg1[%c44] : memref<100xf32, #tpu.memory_space<smem>>
    %c45 = arith.constant 45 : index
    %46 = memref.load %arg1[%c45] : memref<100xf32, #tpu.memory_space<smem>>
    %c46 = arith.constant 46 : index
    %47 = memref.load %arg1[%c46] : memref<100xf32, #tpu.memory_space<smem>>
    %c47 = arith.constant 47 : index
    %48 = memref.load %arg1[%c47] : memref<100xf32, #tpu.memory_space<smem>>
    %c48 = arith.constant 48 : index
    %49 = memref.load %arg1[%c48] : memref<100xf32, #tpu.memory_space<smem>>
    %c49 = arith.constant 49 : index
    %50 = memref.load %arg1[%c49] : memref<100xf32, #tpu.memory_space<smem>>
    %c50 = arith.constant 50 : index
    %51 = memref.load %arg1[%c50] : memref<100xf32, #tpu.memory_space<smem>>
    %c51 = arith.constant 51 : index
    %52 = memref.load %arg1[%c51] : memref<100xf32, #tpu.memory_space<smem>>
    %c52 = arith.constant 52 : index
    %53 = memref.load %arg1[%c52] : memref<100xf32, #tpu.memory_space<smem>>
    %c53 = arith.constant 53 : index
    %54 = memref.load %arg1[%c53] : memref<100xf32, #tpu.memory_space<smem>>
    %c54 = arith.constant 54 : index
    %55 = memref.load %arg1[%c54] : memref<100xf32, #tpu.memory_space<smem>>
    %c55 = arith.constant 55 : index
    %56 = memref.load %arg1[%c55] : memref<100xf32, #tpu.memory_space<smem>>
    %c56 = arith.constant 56 : index
    %57 = memref.load %arg1[%c56] : memref<100xf32, #tpu.memory_space<smem>>
    %c57 = arith.constant 57 : index
    %58 = memref.load %arg1[%c57] : memref<100xf32, #tpu.memory_space<smem>>
    %c58 = arith.constant 58 : index
    %59 = memref.load %arg1[%c58] : memref<100xf32, #tpu.memory_space<smem>>
    %c59 = arith.constant 59 : index
    %60 = memref.load %arg1[%c59] : memref<100xf32, #tpu.memory_space<smem>>
    %c60 = arith.constant 60 : index
    %61 = memref.load %arg1[%c60] : memref<100xf32, #tpu.memory_space<smem>>
    %c61 = arith.constant 61 : index
    %62 = memref.load %arg1[%c61] : memref<100xf32, #tpu.memory_space<smem>>
    %c62 = arith.constant 62 : index
    %63 = memref.load %arg1[%c62] : memref<100xf32, #tpu.memory_space<smem>>
    %c63 = arith.constant 63 : index
    %64 = memref.load %arg1[%c63] : memref<100xf32, #tpu.memory_space<smem>>
    %c64 = arith.constant 64 : index
    %65 = memref.load %arg1[%c64] : memref<100xf32, #tpu.memory_space<smem>>
    %c65 = arith.constant 65 : index
    %66 = memref.load %arg1[%c65] : memref<100xf32, #tpu.memory_space<smem>>
    %c66 = arith.constant 66 : index
    %67 = memref.load %arg1[%c66] : memref<100xf32, #tpu.memory_space<smem>>
    %c67 = arith.constant 67 : index
    %68 = memref.load %arg1[%c67] : memref<100xf32, #tpu.memory_space<smem>>
    %c68 = arith.constant 68 : index
    %69 = memref.load %arg1[%c68] : memref<100xf32, #tpu.memory_space<smem>>
    %c69 = arith.constant 69 : index
    %70 = memref.load %arg1[%c69] : memref<100xf32, #tpu.memory_space<smem>>
    %c70 = arith.constant 70 : index
    %71 = memref.load %arg1[%c70] : memref<100xf32, #tpu.memory_space<smem>>
    %c71 = arith.constant 71 : index
    %72 = memref.load %arg1[%c71] : memref<100xf32, #tpu.memory_space<smem>>
    %c72 = arith.constant 72 : index
    %73 = memref.load %arg1[%c72] : memref<100xf32, #tpu.memory_space<smem>>
    %c73 = arith.constant 73 : index
    %74 = memref.load %arg1[%c73] : memref<100xf32, #tpu.memory_space<smem>>
    %c74 = arith.constant 74 : index
    %75 = memref.load %arg1[%c74] : memref<100xf32, #tpu.memory_space<smem>>
    %c75 = arith.constant 75 : index
    %76 = memref.load %arg1[%c75] : memref<100xf32, #tpu.memory_space<smem>>
    %c76 = arith.constant 76 : index
    %77 = memref.load %arg1[%c76] : memref<100xf32, #tpu.memory_space<smem>>
    %c77 = arith.constant 77 : index
    %78 = memref.load %arg1[%c77] : memref<100xf32, #tpu.memory_space<smem>>
    %c78 = arith.constant 78 : index
    %79 = memref.load %arg1[%c78] : memref<100xf32, #tpu.memory_space<smem>>
    %c79 = arith.constant 79 : index
    %80 = memref.load %arg1[%c79] : memref<100xf32, #tpu.memory_space<smem>>
    %c80 = arith.constant 80 : index
    %81 = memref.load %arg1[%c80] : memref<100xf32, #tpu.memory_space<smem>>
    %c81 = arith.constant 81 : index
    %82 = memref.load %arg1[%c81] : memref<100xf32, #tpu.memory_space<smem>>
    %c82 = arith.constant 82 : index
    %83 = memref.load %arg1[%c82] : memref<100xf32, #tpu.memory_space<smem>>
    %c83 = arith.constant 83 : index
    %84 = memref.load %arg1[%c83] : memref<100xf32, #tpu.memory_space<smem>>
    %c84 = arith.constant 84 : index
    %85 = memref.load %arg1[%c84] : memref<100xf32, #tpu.memory_space<smem>>
    %c85 = arith.constant 85 : index
    %86 = memref.load %arg1[%c85] : memref<100xf32, #tpu.memory_space<smem>>
    %c86 = arith.constant 86 : index
    %87 = memref.load %arg1[%c86] : memref<100xf32, #tpu.memory_space<smem>>
    %c87 = arith.constant 87 : index
    %88 = memref.load %arg1[%c87] : memref<100xf32, #tpu.memory_space<smem>>
    %c88 = arith.constant 88 : index
    %89 = memref.load %arg1[%c88] : memref<100xf32, #tpu.memory_space<smem>>
    %c89 = arith.constant 89 : index
    %90 = memref.load %arg1[%c89] : memref<100xf32, #tpu.memory_space<smem>>
    %c90 = arith.constant 90 : index
    %91 = memref.load %arg1[%c90] : memref<100xf32, #tpu.memory_space<smem>>
    %c91 = arith.constant 91 : index
    %92 = memref.load %arg1[%c91] : memref<100xf32, #tpu.memory_space<smem>>
    %c92 = arith.constant 92 : index
    %93 = memref.load %arg1[%c92] : memref<100xf32, #tpu.memory_space<smem>>
    %c93 = arith.constant 93 : index
    %94 = memref.load %arg1[%c93] : memref<100xf32, #tpu.memory_space<smem>>
    %c94 = arith.constant 94 : index
    %95 = memref.load %arg1[%c94] : memref<100xf32, #tpu.memory_space<smem>>
    %c95 = arith.constant 95 : index
    %96 = memref.load %arg1[%c95] : memref<100xf32, #tpu.memory_space<smem>>
    %c96 = arith.constant 96 : index
    %97 = memref.load %arg1[%c96] : memref<100xf32, #tpu.memory_space<smem>>
    %c97 = arith.constant 97 : index
    %98 = memref.load %arg1[%c97] : memref<100xf32, #tpu.memory_space<smem>>
    %c98 = arith.constant 98 : index
    %99 = memref.load %arg1[%c98] : memref<100xf32, #tpu.memory_space<smem>>
    %c99 = arith.constant 99 : index
    %100 = memref.load %arg1[%c99] : memref<100xf32, #tpu.memory_space<smem>>
    %c0_1 = arith.constant 0 : index
    %c0_2 = arith.constant 0 : index
    %c0_3 = arith.constant 0 : index
    %c0_4 = arith.constant 0 : index
    %101 = vector.load %arg3[%c0_1, %c0_2, %c0_3, %c0_4] : memref<1x4x16x128xf32, #tpu.memory_space<vmem>>, vector<1x1x16x128xf32>
    %102 = vector.shape_cast %101 : vector<1x1x16x128xf32> to vector<16x128xf32>
    %103 = vector.broadcast %1 : f32 to vector<16x128xf32>
    %104 = arith.mulf %102, %103 : vector<16x128xf32>
    %105 = vector.broadcast %2 : f32 to vector<16x128xf32>
    %106 = arith.mulf %102, %105 : vector<16x128xf32>
    %107 = vector.broadcast %3 : f32 to vector<16x128xf32>
    %108 = arith.mulf %102, %107 : vector<16x128xf32>
    %109 = vector.broadcast %4 : f32 to vector<16x128xf32>
    %110 = arith.mulf %102, %109 : vector<16x128xf32>
    %111 = vector.broadcast %5 : f32 to vector<16x128xf32>
    %112 = arith.mulf %102, %111 : vector<16x128xf32>
    %c15_i32 = arith.constant 15 : i32
    %113 = tpu.dynamic_rotate %102 by %c15_i32 dim 0 : vector<16x128xf32>, i32 -> vector<16x128xf32>
    %114 = vector.broadcast %6 : f32 to vector<16x128xf32>
    %115 = arith.mulf %113, %114 : vector<16x128xf32>
    %116 = arith.addf %104, %115 : vector<16x128xf32>
    %117 = vector.broadcast %7 : f32 to vector<16x128xf32>
    %118 = arith.mulf %113, %117 : vector<16x128xf32>
    %119 = arith.addf %106, %118 : vector<16x128xf32>
    %120 = vector.broadcast %8 : f32 to vector<16x128xf32>
    %121 = arith.mulf %113, %120 : vector<16x128xf32>
    %122 = arith.addf %108, %121 : vector<16x128xf32>
    %123 = vector.broadcast %9 : f32 to vector<16x128xf32>
    %124 = arith.mulf %113, %123 : vector<16x128xf32>
    %125 = arith.addf %110, %124 : vector<16x128xf32>
    %126 = vector.broadcast %10 : f32 to vector<16x128xf32>
    %127 = arith.mulf %113, %126 : vector<16x128xf32>
    %128 = arith.addf %112, %127 : vector<16x128xf32>
    %c14_i32 = arith.constant 14 : i32
    %129 = tpu.dynamic_rotate %102 by %c14_i32 dim 0 : vector<16x128xf32>, i32 -> vector<16x128xf32>
    %130 = vector.broadcast %11 : f32 to vector<16x128xf32>
    %131 = arith.mulf %129, %130 : vector<16x128xf32>
    %132 = arith.addf %116, %131 : vector<16x128xf32>
    %133 = vector.broadcast %12 : f32 to vector<16x128xf32>
    %134 = arith.mulf %129, %133 : vector<16x128xf32>
    %135 = arith.addf %119, %134 : vector<16x128xf32>
    %136 = vector.broadcast %13 : f32 to vector<16x128xf32>
    %137 = arith.mulf %129, %136 : vector<16x128xf32>
    %138 = arith.addf %122, %137 : vector<16x128xf32>
    %139 = vector.broadcast %14 : f32 to vector<16x128xf32>
    %140 = arith.mulf %129, %139 : vector<16x128xf32>
    %141 = arith.addf %125, %140 : vector<16x128xf32>
    %142 = vector.broadcast %15 : f32 to vector<16x128xf32>
    %143 = arith.mulf %129, %142 : vector<16x128xf32>
    %144 = arith.addf %128, %143 : vector<16x128xf32>
    %c13_i32 = arith.constant 13 : i32
    %145 = tpu.dynamic_rotate %102 by %c13_i32 dim 0 : vector<16x128xf32>, i32 -> vector<16x128xf32>
    %146 = vector.broadcast %16 : f32 to vector<16x128xf32>
    %147 = arith.mulf %145, %146 : vector<16x128xf32>
    %148 = arith.addf %132, %147 : vector<16x128xf32>
    %149 = vector.broadcast %17 : f32 to vector<16x128xf32>
    %150 = arith.mulf %145, %149 : vector<16x128xf32>
    %151 = arith.addf %135, %150 : vector<16x128xf32>
    %152 = vector.broadcast %18 : f32 to vector<16x128xf32>
    %153 = arith.mulf %145, %152 : vector<16x128xf32>
    %154 = arith.addf %138, %153 : vector<16x128xf32>
    %155 = vector.broadcast %19 : f32 to vector<16x128xf32>
    %156 = arith.mulf %145, %155 : vector<16x128xf32>
    %157 = arith.addf %141, %156 : vector<16x128xf32>
    %158 = vector.broadcast %20 : f32 to vector<16x128xf32>
    %159 = arith.mulf %145, %158 : vector<16x128xf32>
    %160 = arith.addf %144, %159 : vector<16x128xf32>
    %c12_i32 = arith.constant 12 : i32
    %161 = tpu.dynamic_rotate %102 by %c12_i32 dim 0 : vector<16x128xf32>, i32 -> vector<16x128xf32>
    %162 = vector.broadcast %21 : f32 to vector<16x128xf32>
    %163 = arith.mulf %161, %162 : vector<16x128xf32>
    %164 = arith.addf %148, %163 : vector<16x128xf32>
    %165 = vector.broadcast %22 : f32 to vector<16x128xf32>
    %166 = arith.mulf %161, %165 : vector<16x128xf32>
    %167 = arith.addf %151, %166 : vector<16x128xf32>
    %168 = vector.broadcast %23 : f32 to vector<16x128xf32>
    %169 = arith.mulf %161, %168 : vector<16x128xf32>
    %170 = arith.addf %154, %169 : vector<16x128xf32>
    %171 = vector.broadcast %24 : f32 to vector<16x128xf32>
    %172 = arith.mulf %161, %171 : vector<16x128xf32>
    %173 = arith.addf %157, %172 : vector<16x128xf32>
    %174 = vector.broadcast %25 : f32 to vector<16x128xf32>
    %175 = arith.mulf %161, %174 : vector<16x128xf32>
    %176 = arith.addf %160, %175 : vector<16x128xf32>
    %c0_5 = arith.constant 0 : index
    %c1_6 = arith.constant 1 : index
    %c0_7 = arith.constant 0 : index
    %c0_8 = arith.constant 0 : index
    %177 = vector.load %arg3[%c0_5, %c1_6, %c0_7, %c0_8] : memref<1x4x16x128xf32, #tpu.memory_space<vmem>>, vector<1x1x16x128xf32>
    %178 = vector.shape_cast %177 : vector<1x1x16x128xf32> to vector<16x128xf32>
    %179 = vector.broadcast %26 : f32 to vector<16x128xf32>
    %180 = arith.mulf %178, %179 : vector<16x128xf32>
    %181 = arith.addf %164, %180 : vector<16x128xf32>
    %182 = vector.broadcast %27 : f32 to vector<16x128xf32>
    %183 = arith.mulf %178, %182 : vector<16x128xf32>
    %184 = arith.addf %167, %183 : vector<16x128xf32>
    %185 = vector.broadcast %28 : f32 to vector<16x128xf32>
    %186 = arith.mulf %178, %185 : vector<16x128xf32>
    %187 = arith.addf %170, %186 : vector<16x128xf32>
    %188 = vector.broadcast %29 : f32 to vector<16x128xf32>
    %189 = arith.mulf %178, %188 : vector<16x128xf32>
    %190 = arith.addf %173, %189 : vector<16x128xf32>
    %191 = vector.broadcast %30 : f32 to vector<16x128xf32>
    %192 = arith.mulf %178, %191 : vector<16x128xf32>
    %193 = arith.addf %176, %192 : vector<16x128xf32>
    %c15_i32_9 = arith.constant 15 : i32
    %194 = tpu.dynamic_rotate %178 by %c15_i32_9 dim 0 : vector<16x128xf32>, i32 -> vector<16x128xf32>
    %195 = vector.broadcast %31 : f32 to vector<16x128xf32>
    %196 = arith.mulf %194, %195 : vector<16x128xf32>
    %197 = arith.addf %181, %196 : vector<16x128xf32>
    %198 = vector.broadcast %32 : f32 to vector<16x128xf32>
    %199 = arith.mulf %194, %198 : vector<16x128xf32>
    %200 = arith.addf %184, %199 : vector<16x128xf32>
    %201 = vector.broadcast %33 : f32 to vector<16x128xf32>
    %202 = arith.mulf %194, %201 : vector<16x128xf32>
    %203 = arith.addf %187, %202 : vector<16x128xf32>
    %204 = vector.broadcast %34 : f32 to vector<16x128xf32>
    %205 = arith.mulf %194, %204 : vector<16x128xf32>
    %206 = arith.addf %190, %205 : vector<16x128xf32>
    %207 = vector.broadcast %35 : f32 to vector<16x128xf32>
    %208 = arith.mulf %194, %207 : vector<16x128xf32>
    %209 = arith.addf %193, %208 : vector<16x128xf32>
    %c14_i32_10 = arith.constant 14 : i32
    %210 = tpu.dynamic_rotate %178 by %c14_i32_10 dim 0 : vector<16x128xf32>, i32 -> vector<16x128xf32>
    %211 = vector.broadcast %36 : f32 to vector<16x128xf32>
    %212 = arith.mulf %210, %211 : vector<16x128xf32>
    %213 = arith.addf %197, %212 : vector<16x128xf32>
    %214 = vector.broadcast %37 : f32 to vector<16x128xf32>
    %215 = arith.mulf %210, %214 : vector<16x128xf32>
    %216 = arith.addf %200, %215 : vector<16x128xf32>
    %217 = vector.broadcast %38 : f32 to vector<16x128xf32>
    %218 = arith.mulf %210, %217 : vector<16x128xf32>
    %219 = arith.addf %203, %218 : vector<16x128xf32>
    %220 = vector.broadcast %39 : f32 to vector<16x128xf32>
    %221 = arith.mulf %210, %220 : vector<16x128xf32>
    %222 = arith.addf %206, %221 : vector<16x128xf32>
    %223 = vector.broadcast %40 : f32 to vector<16x128xf32>
    %224 = arith.mulf %210, %223 : vector<16x128xf32>
    %225 = arith.addf %209, %224 : vector<16x128xf32>
    %c13_i32_11 = arith.constant 13 : i32
    %226 = tpu.dynamic_rotate %178 by %c13_i32_11 dim 0 : vector<16x128xf32>, i32 -> vector<16x128xf32>
    %227 = vector.broadcast %41 : f32 to vector<16x128xf32>
    %228 = arith.mulf %226, %227 : vector<16x128xf32>
    %229 = arith.addf %213, %228 : vector<16x128xf32>
    %230 = vector.broadcast %42 : f32 to vector<16x128xf32>
    %231 = arith.mulf %226, %230 : vector<16x128xf32>
    %232 = arith.addf %216, %231 : vector<16x128xf32>
    %233 = vector.broadcast %43 : f32 to vector<16x128xf32>
    %234 = arith.mulf %226, %233 : vector<16x128xf32>
    %235 = arith.addf %219, %234 : vector<16x128xf32>
    %236 = vector.broadcast %44 : f32 to vector<16x128xf32>
    %237 = arith.mulf %226, %236 : vector<16x128xf32>
    %238 = arith.addf %222, %237 : vector<16x128xf32>
    %239 = vector.broadcast %45 : f32 to vector<16x128xf32>
    %240 = arith.mulf %226, %239 : vector<16x128xf32>
    %241 = arith.addf %225, %240 : vector<16x128xf32>
    %c12_i32_12 = arith.constant 12 : i32
    %242 = tpu.dynamic_rotate %178 by %c12_i32_12 dim 0 : vector<16x128xf32>, i32 -> vector<16x128xf32>
    %243 = vector.broadcast %46 : f32 to vector<16x128xf32>
    %244 = arith.mulf %242, %243 : vector<16x128xf32>
    %245 = arith.addf %229, %244 : vector<16x128xf32>
    %246 = vector.broadcast %47 : f32 to vector<16x128xf32>
    %247 = arith.mulf %242, %246 : vector<16x128xf32>
    %248 = arith.addf %232, %247 : vector<16x128xf32>
    %249 = vector.broadcast %48 : f32 to vector<16x128xf32>
    %250 = arith.mulf %242, %249 : vector<16x128xf32>
    %251 = arith.addf %235, %250 : vector<16x128xf32>
    %252 = vector.broadcast %49 : f32 to vector<16x128xf32>
    %253 = arith.mulf %242, %252 : vector<16x128xf32>
    %254 = arith.addf %238, %253 : vector<16x128xf32>
    %255 = vector.broadcast %50 : f32 to vector<16x128xf32>
    %256 = arith.mulf %242, %255 : vector<16x128xf32>
    %257 = arith.addf %241, %256 : vector<16x128xf32>
    %c0_13 = arith.constant 0 : index
    %c2_14 = arith.constant 2 : index
    %c0_15 = arith.constant 0 : index
    %c0_16 = arith.constant 0 : index
    %258 = vector.load %arg3[%c0_13, %c2_14, %c0_15, %c0_16] : memref<1x4x16x128xf32, #tpu.memory_space<vmem>>, vector<1x1x16x128xf32>
    %259 = vector.shape_cast %258 : vector<1x1x16x128xf32> to vector<16x128xf32>
    %260 = vector.broadcast %51 : f32 to vector<16x128xf32>
    %261 = arith.mulf %259, %260 : vector<16x128xf32>
    %262 = arith.addf %245, %261 : vector<16x128xf32>
    %263 = vector.broadcast %52 : f32 to vector<16x128xf32>
    %264 = arith.mulf %259, %263 : vector<16x128xf32>
    %265 = arith.addf %248, %264 : vector<16x128xf32>
    %266 = vector.broadcast %53 : f32 to vector<16x128xf32>
    %267 = arith.mulf %259, %266 : vector<16x128xf32>
    %268 = arith.addf %251, %267 : vector<16x128xf32>
    %269 = vector.broadcast %54 : f32 to vector<16x128xf32>
    %270 = arith.mulf %259, %269 : vector<16x128xf32>
    %271 = arith.addf %254, %270 : vector<16x128xf32>
    %272 = vector.broadcast %55 : f32 to vector<16x128xf32>
    %273 = arith.mulf %259, %272 : vector<16x128xf32>
    %274 = arith.addf %257, %273 : vector<16x128xf32>
    %c15_i32_17 = arith.constant 15 : i32
    %275 = tpu.dynamic_rotate %259 by %c15_i32_17 dim 0 : vector<16x128xf32>, i32 -> vector<16x128xf32>
    %276 = vector.broadcast %56 : f32 to vector<16x128xf32>
    %277 = arith.mulf %275, %276 : vector<16x128xf32>
    %278 = arith.addf %262, %277 : vector<16x128xf32>
    %279 = vector.broadcast %57 : f32 to vector<16x128xf32>
    %280 = arith.mulf %275, %279 : vector<16x128xf32>
    %281 = arith.addf %265, %280 : vector<16x128xf32>
    %282 = vector.broadcast %58 : f32 to vector<16x128xf32>
    %283 = arith.mulf %275, %282 : vector<16x128xf32>
    %284 = arith.addf %268, %283 : vector<16x128xf32>
    %285 = vector.broadcast %59 : f32 to vector<16x128xf32>
    %286 = arith.mulf %275, %285 : vector<16x128xf32>
    %287 = arith.addf %271, %286 : vector<16x128xf32>
    %288 = vector.broadcast %60 : f32 to vector<16x128xf32>
    %289 = arith.mulf %275, %288 : vector<16x128xf32>
    %290 = arith.addf %274, %289 : vector<16x128xf32>
    %c14_i32_18 = arith.constant 14 : i32
    %291 = tpu.dynamic_rotate %259 by %c14_i32_18 dim 0 : vector<16x128xf32>, i32 -> vector<16x128xf32>
    %292 = vector.broadcast %61 : f32 to vector<16x128xf32>
    %293 = arith.mulf %291, %292 : vector<16x128xf32>
    %294 = arith.addf %278, %293 : vector<16x128xf32>
    %295 = vector.broadcast %62 : f32 to vector<16x128xf32>
    %296 = arith.mulf %291, %295 : vector<16x128xf32>
    %297 = arith.addf %281, %296 : vector<16x128xf32>
    %298 = vector.broadcast %63 : f32 to vector<16x128xf32>
    %299 = arith.mulf %291, %298 : vector<16x128xf32>
    %300 = arith.addf %284, %299 : vector<16x128xf32>
    %301 = vector.broadcast %64 : f32 to vector<16x128xf32>
    %302 = arith.mulf %291, %301 : vector<16x128xf32>
    %303 = arith.addf %287, %302 : vector<16x128xf32>
    %304 = vector.broadcast %65 : f32 to vector<16x128xf32>
    %305 = arith.mulf %291, %304 : vector<16x128xf32>
    %306 = arith.addf %290, %305 : vector<16x128xf32>
    %c13_i32_19 = arith.constant 13 : i32
    %307 = tpu.dynamic_rotate %259 by %c13_i32_19 dim 0 : vector<16x128xf32>, i32 -> vector<16x128xf32>
    %308 = vector.broadcast %66 : f32 to vector<16x128xf32>
    %309 = arith.mulf %307, %308 : vector<16x128xf32>
    %310 = arith.addf %294, %309 : vector<16x128xf32>
    %311 = vector.broadcast %67 : f32 to vector<16x128xf32>
    %312 = arith.mulf %307, %311 : vector<16x128xf32>
    %313 = arith.addf %297, %312 : vector<16x128xf32>
    %314 = vector.broadcast %68 : f32 to vector<16x128xf32>
    %315 = arith.mulf %307, %314 : vector<16x128xf32>
    %316 = arith.addf %300, %315 : vector<16x128xf32>
    %317 = vector.broadcast %69 : f32 to vector<16x128xf32>
    %318 = arith.mulf %307, %317 : vector<16x128xf32>
    %319 = arith.addf %303, %318 : vector<16x128xf32>
    %320 = vector.broadcast %70 : f32 to vector<16x128xf32>
    %321 = arith.mulf %307, %320 : vector<16x128xf32>
    %322 = arith.addf %306, %321 : vector<16x128xf32>
    %c12_i32_20 = arith.constant 12 : i32
    %323 = tpu.dynamic_rotate %259 by %c12_i32_20 dim 0 : vector<16x128xf32>, i32 -> vector<16x128xf32>
    %324 = vector.broadcast %71 : f32 to vector<16x128xf32>
    %325 = arith.mulf %323, %324 : vector<16x128xf32>
    %326 = arith.addf %310, %325 : vector<16x128xf32>
    %327 = vector.broadcast %72 : f32 to vector<16x128xf32>
    %328 = arith.mulf %323, %327 : vector<16x128xf32>
    %329 = arith.addf %313, %328 : vector<16x128xf32>
    %330 = vector.broadcast %73 : f32 to vector<16x128xf32>
    %331 = arith.mulf %323, %330 : vector<16x128xf32>
    %332 = arith.addf %316, %331 : vector<16x128xf32>
    %333 = vector.broadcast %74 : f32 to vector<16x128xf32>
    %334 = arith.mulf %323, %333 : vector<16x128xf32>
    %335 = arith.addf %319, %334 : vector<16x128xf32>
    %336 = vector.broadcast %75 : f32 to vector<16x128xf32>
    %337 = arith.mulf %323, %336 : vector<16x128xf32>
    %338 = arith.addf %322, %337 : vector<16x128xf32>
    %c0_21 = arith.constant 0 : index
    %c3_22 = arith.constant 3 : index
    %c0_23 = arith.constant 0 : index
    %c0_24 = arith.constant 0 : index
    %339 = vector.load %arg3[%c0_21, %c3_22, %c0_23, %c0_24] : memref<1x4x16x128xf32, #tpu.memory_space<vmem>>, vector<1x1x16x128xf32>
    %340 = vector.shape_cast %339 : vector<1x1x16x128xf32> to vector<16x128xf32>
    %341 = vector.broadcast %76 : f32 to vector<16x128xf32>
    %342 = arith.mulf %340, %341 : vector<16x128xf32>
    %343 = arith.addf %326, %342 : vector<16x128xf32>
    %344 = vector.broadcast %77 : f32 to vector<16x128xf32>
    %345 = arith.mulf %340, %344 : vector<16x128xf32>
    %346 = arith.addf %329, %345 : vector<16x128xf32>
    %347 = vector.broadcast %78 : f32 to vector<16x128xf32>
    %348 = arith.mulf %340, %347 : vector<16x128xf32>
    %349 = arith.addf %332, %348 : vector<16x128xf32>
    %350 = vector.broadcast %79 : f32 to vector<16x128xf32>
    %351 = arith.mulf %340, %350 : vector<16x128xf32>
    %352 = arith.addf %335, %351 : vector<16x128xf32>
    %353 = vector.broadcast %80 : f32 to vector<16x128xf32>
    %354 = arith.mulf %340, %353 : vector<16x128xf32>
    %355 = arith.addf %338, %354 : vector<16x128xf32>
    %c15_i32_25 = arith.constant 15 : i32
    %356 = tpu.dynamic_rotate %340 by %c15_i32_25 dim 0 : vector<16x128xf32>, i32 -> vector<16x128xf32>
    %357 = vector.broadcast %81 : f32 to vector<16x128xf32>
    %358 = arith.mulf %356, %357 : vector<16x128xf32>
    %359 = arith.addf %343, %358 : vector<16x128xf32>
    %360 = vector.broadcast %82 : f32 to vector<16x128xf32>
    %361 = arith.mulf %356, %360 : vector<16x128xf32>
    %362 = arith.addf %346, %361 : vector<16x128xf32>
    %363 = vector.broadcast %83 : f32 to vector<16x128xf32>
    %364 = arith.mulf %356, %363 : vector<16x128xf32>
    %365 = arith.addf %349, %364 : vector<16x128xf32>
    %366 = vector.broadcast %84 : f32 to vector<16x128xf32>
    %367 = arith.mulf %356, %366 : vector<16x128xf32>
    %368 = arith.addf %352, %367 : vector<16x128xf32>
    %369 = vector.broadcast %85 : f32 to vector<16x128xf32>
    %370 = arith.mulf %356, %369 : vector<16x128xf32>
    %371 = arith.addf %355, %370 : vector<16x128xf32>
    %c14_i32_26 = arith.constant 14 : i32
    %372 = tpu.dynamic_rotate %340 by %c14_i32_26 dim 0 : vector<16x128xf32>, i32 -> vector<16x128xf32>
    %373 = vector.broadcast %86 : f32 to vector<16x128xf32>
    %374 = arith.mulf %372, %373 : vector<16x128xf32>
    %375 = arith.addf %359, %374 : vector<16x128xf32>
    %376 = vector.broadcast %87 : f32 to vector<16x128xf32>
    %377 = arith.mulf %372, %376 : vector<16x128xf32>
    %378 = arith.addf %362, %377 : vector<16x128xf32>
    %379 = vector.broadcast %88 : f32 to vector<16x128xf32>
    %380 = arith.mulf %372, %379 : vector<16x128xf32>
    %381 = arith.addf %365, %380 : vector<16x128xf32>
    %382 = vector.broadcast %89 : f32 to vector<16x128xf32>
    %383 = arith.mulf %372, %382 : vector<16x128xf32>
    %384 = arith.addf %368, %383 : vector<16x128xf32>
    %385 = vector.broadcast %90 : f32 to vector<16x128xf32>
    %386 = arith.mulf %372, %385 : vector<16x128xf32>
    %387 = arith.addf %371, %386 : vector<16x128xf32>
    %c13_i32_27 = arith.constant 13 : i32
    %388 = tpu.dynamic_rotate %340 by %c13_i32_27 dim 0 : vector<16x128xf32>, i32 -> vector<16x128xf32>
    %389 = vector.broadcast %91 : f32 to vector<16x128xf32>
    %390 = arith.mulf %388, %389 : vector<16x128xf32>
    %391 = arith.addf %375, %390 : vector<16x128xf32>
    %392 = vector.broadcast %92 : f32 to vector<16x128xf32>
    %393 = arith.mulf %388, %392 : vector<16x128xf32>
    %394 = arith.addf %378, %393 : vector<16x128xf32>
    %395 = vector.broadcast %93 : f32 to vector<16x128xf32>
    %396 = arith.mulf %388, %395 : vector<16x128xf32>
    %397 = arith.addf %381, %396 : vector<16x128xf32>
    %398 = vector.broadcast %94 : f32 to vector<16x128xf32>
    %399 = arith.mulf %388, %398 : vector<16x128xf32>
    %400 = arith.addf %384, %399 : vector<16x128xf32>
    %401 = vector.broadcast %95 : f32 to vector<16x128xf32>
    %402 = arith.mulf %388, %401 : vector<16x128xf32>
    %403 = arith.addf %387, %402 : vector<16x128xf32>
    %c12_i32_28 = arith.constant 12 : i32
    %404 = tpu.dynamic_rotate %340 by %c12_i32_28 dim 0 : vector<16x128xf32>, i32 -> vector<16x128xf32>
    %405 = vector.broadcast %96 : f32 to vector<16x128xf32>
    %406 = arith.mulf %404, %405 : vector<16x128xf32>
    %407 = arith.addf %391, %406 : vector<16x128xf32>
    %408 = vector.broadcast %97 : f32 to vector<16x128xf32>
    %409 = arith.mulf %404, %408 : vector<16x128xf32>
    %410 = arith.addf %394, %409 : vector<16x128xf32>
    %411 = vector.broadcast %98 : f32 to vector<16x128xf32>
    %412 = arith.mulf %404, %411 : vector<16x128xf32>
    %413 = arith.addf %397, %412 : vector<16x128xf32>
    %414 = vector.broadcast %99 : f32 to vector<16x128xf32>
    %415 = arith.mulf %404, %414 : vector<16x128xf32>
    %416 = arith.addf %400, %415 : vector<16x128xf32>
    %417 = vector.broadcast %100 : f32 to vector<16x128xf32>
    %418 = arith.mulf %404, %417 : vector<16x128xf32>
    %419 = arith.addf %403, %418 : vector<16x128xf32>
    %420 = vector.broadcast %0 : f32 to vector<16x128xf32>
    %421 = arith.addf %407, %420 : vector<16x128xf32>
    %c127_i32 = arith.constant 127 : i32
    %422 = tpu.dynamic_rotate %410 by %c127_i32 dim 1 : vector<16x128xf32>, i32 -> vector<16x128xf32>
    %423 = arith.addf %421, %422 : vector<16x128xf32>
    %c126_i32 = arith.constant 126 : i32
    %424 = tpu.dynamic_rotate %413 by %c126_i32 dim 1 : vector<16x128xf32>, i32 -> vector<16x128xf32>
    %425 = arith.addf %423, %424 : vector<16x128xf32>
    %c125_i32 = arith.constant 125 : i32
    %426 = tpu.dynamic_rotate %416 by %c125_i32 dim 1 : vector<16x128xf32>, i32 -> vector<16x128xf32>
    %427 = arith.addf %425, %426 : vector<16x128xf32>
    %c124_i32 = arith.constant 124 : i32
    %428 = tpu.dynamic_rotate %419 by %c124_i32 dim 1 : vector<16x128xf32>, i32 -> vector<16x128xf32>
    %429 = arith.addf %427, %428 : vector<16x128xf32>
    %c0_29 = arith.constant 0 : index
    %c0_30 = arith.constant 0 : index
    %c0_31 = arith.constant 0 : index
    %430 = vector.load %arg4[%c0_29, %c0_30, %c0_31] : memref<1x16x128xf32, #tpu.memory_space<vmem>>, vector<1x16x128xf32>
    %431 = vector.shape_cast %430 : vector<1x16x128xf32> to vector<16x128xf32>
    %432 = vector.shape_cast %429 : vector<16x128xf32> to vector<1x16x128xf32>
    tpu.vector_store %arg4[%c0_29, %c0_30, %c0_31], %432 {strides = array<i32>} : memref<1x16x128xf32, #tpu.memory_space<vmem>>, vector<1x16x128xf32>,
    return
  }
  func.func @transform_0(%arg0: i32) -> i32 {
    %c0_i32 = arith.constant 0 : i32
    %c0_i32_0 = arith.constant 0 : i32
    return %c0_i32 : i32
  }
  func.func @transform_1(%arg0: i32) -> i32 {
    %c0_i32 = arith.constant 0 : i32
    %c0_i32_0 = arith.constant 0 : i32
    return %c0_i32 : i32
  }
  func.func @transform_2(%arg0: i32) -> (i32, i32, i32, i32) {
    %c0_i32 = arith.constant 0 : i32
    %c0_i32_0 = arith.constant 0 : i32
    %c0_i32_1 = arith.constant 0 : i32
    %c0_i32_2 = arith.constant 0 : i32
    return %arg0, %c0_i32, %c0_i32_0, %c0_i32_1 : i32, i32, i32, i32
  }
  func.func @transform_3(%arg0: i32) -> (i32, i32, i32) {
    %c0_i32 = arith.constant 0 : i32
    %c0_i32_0 = arith.constant 0 : i32
    %c0_i32_1 = arith.constant 0 : i32
    return %arg0, %c0_i32, %c0_i32_0 : i32, i32, i32
  }
}

</mosaic_0001>

<llo_original>
// kernel: tpu_custom_call.1
$region0: #{tpu_custom_call.1}
  #allocation0 [shape = 'u32[]', space=smem, size = 0x4, offset = 0x4, fixed_abs, tag = 'smem constant byte address 0x4 - core index']
  #allocation1 [shape = 'u32[144,128]{1,0:T(1,128)}', space=vmem, size = 0x12000, scoped, tag = 'internal scratch']
  #allocation2 [shape = 'f32[1]{0:T(128)S(6)}', space=smem, size = 0x200, scoped, tag = 'scoped memory for tpu_custom_call.1']
  %s0 = inlined_call_operand.vmem [shape: f32[100], index: 0, kind: input, shape index: {}]
  %s1 = inlined_call_operand.<no memory space> [shape: f32[1], index: 1, kind: input, shape index: {}]
  %s2 = inlined_call_operand.hbm [shape: f32[1,4,16,128], index: 2, kind: input, shape index: {}]
  %s3 = inlined_call_operand.hbm [shape: f32[1,16,128], index: 3, kind: output, shape index: {}]
  %s4 = sld [smem:[#allocation0]]
  $region30: #{tpu_custom_call.1} parent=0
    _
  %s6 = ssub.s32 1, %s4
  %s7 = scalar_select 0, %s6, %s4
  %8 = sst [smem:[#allocation2]] %s1
  $region1: #{tpu_custom_call.1} parent=0
    #allocation3 [shape = 'u8[512]{0}', space=smem, size = 0x200, scoped, tag = 'input window, operand 0, single buffered']
    #allocation4 [shape = 's32[1]{0}', space=sflag, size = 0x4, scoped, tag = 'scoped memory for tpu_custom_call.1']
    #allocation5 [shape = 's32[1]{0}', space=sflag, size = 0x4, scoped, tag = 'scoped memory for tpu_custom_call.1']
    #allocation6 [shape = 's32[1]{0}', space=sflag, size = 0x4, scoped, tag = 'scoped memory for tpu_custom_call.1']
    #allocation7 [shape = 'u8[32768]{0}', space=vmem, size = 0x8000, scoped, tag = 'input window, operand 2, single buffered']
    #allocation8 [shape = 'u8[8192]{0}', space=vmem, size = 0x2000, scoped, tag = 'output window, operand 0, single buffered']
    %9 = vsyncpa [#allocation6], 0
    %10 = vsyncpa [#allocation4], 0
    %11 = vsyncpa [#allocation5], 0
    // Predicated region
    $region2: #{tpu_custom_call.1} parent=1 // pred_check
      _
    $region3: #{tpu_custom_call.1} parent=1 // pred_check_branch
      %13 = sbr.rel (0) target = $region5
    $region4: #{tpu_custom_call.1} parent=1 // pred_region
      %s15 = ssub.s32 16, 16
      %16 = vsyncadd [#allocation6], %s15
      %s18 = sshll.u32 %s0, 4
      %s19 = int_to_ptr.vmem [resolvable:$true] %s18
      %21 = dma.vmem_to_smem %s19, 16, [#allocation3], [#allocation6]
    $region5: #{tpu_custom_call.1} parent=1 // pred_fallthru
      _
    // Predicated region
    $region6: #{tpu_custom_call.1} parent=1 // pred_check
      _
    $region7: #{tpu_custom_call.1} parent=1 // pred_check_branch
      %23 = sbr.rel (0) target = $region9
    $region8: #{tpu_custom_call.1} parent=1 // pred_region
      _
    $region9: #{tpu_custom_call.1} parent=1 // pred_fallthru
      _
    // Predicated region
    $region10: #{tpu_custom_call.1} parent=1 // pred_check
      _
    $region11: #{tpu_custom_call.1} parent=1 // pred_check_branch
      %25 = sbr.rel (0) target = $region13
    $region12: #{tpu_custom_call.1} parent=1 // pred_region
      %s27 = ssub.s32 1024, 1024
      %28 = vsyncadd [#allocation4], %s27
      %s29 = sshll.u32 [#allocation7], 4
      %s30 = int_to_ptr.vmem [resolvable:$true] %s29
      %35 = dma.hbm_to_vmem [thread:$0]  %s2, 1024, %s30, [#allocation4], 128, 128, 8
    $region13: #{tpu_custom_call.1} parent=1 // pred_fallthru
      _
    // Predicated region
    $region14: #{tpu_custom_call.1} parent=1 // pred_check
      _
    $region15: #{tpu_custom_call.1} parent=1 // pred_check_branch
      %37 = sbr.rel (0) target = $region17
    $region16: #{tpu_custom_call.1} parent=1 // pred_region
      %38 = dma.done [#allocation6], 16
    $region17: #{tpu_custom_call.1} parent=1 // pred_fallthru
      _
    // Predicated region
    $region18: #{tpu_custom_call.1} parent=1 // pred_check
      _
    $region19: #{tpu_custom_call.1} parent=1 // pred_check_branch
      %40 = sbr.rel (0) target = $region21
    $region20: #{tpu_custom_call.1} parent=1 // pred_region
      %41 = dma.done [#allocation4], 1024
    $region21: #{tpu_custom_call.1} parent=1 // pred_fallthru
      _
    %42 = sfence
    %s43 = sld [smem:[#allocation2]]
    %s44 = sld [smem:[#allocation3]]
    %s45 = sld [smem:[#allocation3 + $0x1]]
    %s46 = sld [smem:[#allocation3 + $0x2]]
    %s47 = sld [smem:[#allocation3 + $0x3]]
    %s48 = sld [smem:[#allocation3 + $0x4]]
    %s49 = sld [smem:[#allocation3 + $0x5]]
    %s50 = sld [smem:[#allocation3 + $0x6]]
    %s51 = sld [smem:[#allocation3 + $0x7]]
    %s52 = sld [smem:[#allocation3 + $0x8]]
    %s53 = sld [smem:[#allocation3 + $0x9]]
    %s54 = sld [smem:[#allocation3 + $0xa]]
    %s55 = sld [smem:[#allocation3 + $0xb]]
    %s56 = sld [smem:[#allocation3 + $0xc]]
    %s57 = sld [smem:[#allocation3 + $0xd]]
    %s58 = sld [smem:[#allocation3 + $0xe]]
    %s59 = sld [smem:[#allocation3 + $0xf]]
    %s60 = sld [smem:[#allocation3 + $0x10]]
    %s61 = sld [smem:[#allocation3 + $0x11]]
    %s62 = sld [smem:[#allocation3 + $0x12]]
    %s63 = sld [smem:[#allocation3 + $0x13]]
    %s64 = sld [smem:[#allocation3 + $0x14]]
    %s65 = sld [smem:[#allocation3 + $0x15]]
    %s66 = sld [smem:[#allocation3 + $0x16]]
    %s67 = sld [smem:[#allocation3 + $0x17]]
    %s68 = sld [smem:[#allocation3 + $0x18]]
    %s69 = sld [smem:[#allocation3 + $0x19]]
    %s70 = sld [smem:[#allocation3 + $0x1a]]
    %s71 = sld [smem:[#allocation3 + $0x1b]]
    %s72 = sld [smem:[#allocation3 + $0x1c]]
    %s73 = sld [smem:[#allocation3 + $0x1d]]
    %s74 = sld [smem:[#allocation3 + $0x1e]]
    %s75 = sld [smem:[#allocation3 + $0x1f]]
    %s76 = sld [smem:[#allocation3 + $0x20]]
    %s77 = sld [smem:[#allocation3 + $0x21]]
    %s78 = sld [smem:[#allocation3 + $0x22]]
    %s79 = sld [smem:[#allocation3 + $0x23]]
    %s80 = sld [smem:[#allocation3 + $0x24]]
    %s81 = sld [smem:[#allocation3 + $0x25]]
    %s82 = sld [smem:[#allocation3 + $0x26]]
    %s83 = sld [smem:[#allocation3 + $0x27]]
    %s84 = sld [smem:[#allocation3 + $0x28]]
    %s85 = sld [smem:[#allocation3 + $0x29]]
    %s86 = sld [smem:[#allocation3 + $0x2a]]
    %s87 = sld [smem:[#allocation3 + $0x2b]]
    %s88 = sld [smem:[#allocation3 + $0x2c]]
    %s89 = sld [smem:[#allocation3 + $0x2d]]
    %s90 = sld [smem:[#allocation3 + $0x2e]]
    %s91 = sld [smem:[#allocation3 + $0x2f]]
    %s92 = sld [smem:[#allocation3 + $0x30]]
    %s93 = sld [smem:[#allocation3 + $0x31]]
    %s94 = sld [smem:[#allocation3 + $0x32]]
    %s95 = sld [smem:[#allocation3 + $0x33]]
    %s96 = sld [smem:[#allocation3 + $0x34]]
    %s97 = sld [smem:[#allocation3 + $0x35]]
    %s98 = sld [smem:[#allocation3 + $0x36]]
    %s99 = sld [smem:[#allocation3 + $0x37]]
    %s100 = sld [smem:[#allocation3 + $0x38]]
    %s101 = sld [smem:[#allocation3 + $0x39]]
    %s102 = sld [smem:[#allocation3 + $0x3a]]
    %s103 = sld [smem:[#allocation3 + $0x3b]]
    %s104 = sld [smem:[#allocation3 + $0x3c]]
    %s105 = sld [smem:[#allocation3 + $0x3d]]
    %s106 = sld [smem:[#allocation3 + $0x3e]]
    %s107 = sld [smem:[#allocation3 + $0x3f]]
    %s108 = sld [smem:[#allocation3 + $0x40]]
    %s109 = sld [smem:[#allocation3 + $0x41]]
    %s110 = sld [smem:[#allocation3 + $0x42]]
    %s111 = sld [smem:[#allocation3 + $0x43]]
    %s112 = sld [smem:[#allocation3 + $0x44]]
    %s113 = sld [smem:[#allocation3 + $0x45]]
    %s114 = sld [smem:[#allocation3 + $0x46]]
    %s115 = sld [smem:[#allocation3 + $0x47]]
    %s116 = sld [smem:[#allocation3 + $0x48]]
    %s117 = sld [smem:[#allocation3 + $0x49]]
    %s118 = sld [smem:[#allocation3 + $0x4a]]
    %s119 = sld [smem:[#allocation3 + $0x4b]]
    %s120 = sld [smem:[#allocation3 + $0x4c]]
    %s121 = sld [smem:[#allocation3 + $0x4d]]
    %s122 = sld [smem:[#allocation3 + $0x4e]]
    %s123 = sld [smem:[#allocation3 + $0x4f]]
    %s124 = sld [smem:[#allocation3 + $0x50]]
    %s125 = sld [smem:[#allocation3 + $0x51]]
    %s126 = sld [smem:[#allocation3 + $0x52]]
    %s127 = sld [smem:[#allocation3 + $0x53]]
    %s128 = sld [smem:[#allocation3 + $0x54]]
    %s129 = sld [smem:[#allocation3 + $0x55]]
    %s130 = sld [smem:[#allocation3 + $0x56]]
    %s131 = sld [smem:[#allocation3 + $0x57]]
    %s132 = sld [smem:[#allocation3 + $0x58]]
    %s133 = sld [smem:[#allocation3 + $0x59]]
    %s134 = sld [smem:[#allocation3 + $0x5a]]
    %s135 = sld [smem:[#allocation3 + $0x5b]]
    %s136 = sld [smem:[#allocation3 + $0x5c]]
    %s137 = sld [smem:[#allocation3 + $0x5d]]
    %s138 = sld [smem:[#allocation3 + $0x5e]]
    %s139 = sld [smem:[#allocation3 + $0x5f]]
    %s140 = sld [smem:[#allocation3 + $0x60]]
    %s141 = sld [smem:[#allocation3 + $0x61]]
    %s142 = sld [smem:[#allocation3 + $0x62]]
    %s143 = sld [smem:[#allocation3 + $0x63]]
    %v144 = vld [vmem:[#allocation7] sm:$0xff]
    %v145 = vld [vmem:[#allocation7 + $0x8] sm:$0xff]
    %v146 = vstv %s44
    %v147 = vmul.f32 %v144, %v146
    %v148 = vmul.f32 %v145, %v146
    %v149 = vstv %s45
    %v150 = vmul.f32 %v144, %v149
    %v151 = vmul.f32 %v145, %v149
    %v152 = vstv %s46
    %v153 = vmul.f32 %v144, %v152
    %v154 = vmul.f32 %v145, %v152
    %v155 = vstv %s47
    %v156 = vmul.f32 %v144, %v155
    %v157 = vmul.f32 %v145, %v155
    %v158 = vstv %s48
    %v159 = vmul.f32 %v144, %v158
    %v160 = vmul.f32 %v145, %v158
    %v161 = vrot.slane %v144, 1
    %v162 = vrot.slane %v145, 1
    %v163 = vlaneseq
    %v164 = vshrl.u32 %v163, 7
    %vm165 = vcmp.lt.s32.totalorder %v164, 7
    %v166 = vsel %vm165, %v161, %v162
    %v167 = vsel %vm165, %v162, %v161
    %v168 = vstv %s49
    %v169 = vmul.f32 %v166, %v168
    %v170 = vmul.f32 %v167, %v168
    %v171 = vadd.f32 %v147, %v169
    %v172 = vadd.f32 %v148, %v170
    %v173 = vstv %s50
    %v174 = vmul.f32 %v166, %v173
    %v175 = vmul.f32 %v167, %v173
    %v176 = vadd.f32 %v150, %v174
    %v177 = vadd.f32 %v151, %v175
    %v178 = vstv %s51
    %v179 = vmul.f32 %v166, %v178
    %v180 = vmul.f32 %v167, %v178
    %v181 = vadd.f32 %v153, %v179
    %v182 = vadd.f32 %v154, %v180
    %v183 = vstv %s52
    %v184 = vmul.f32 %v166, %v183
    %v185 = vmul.f32 %v167, %v183
    %v186 = vadd.f32 %v156, %v184
    %v187 = vadd.f32 %v157, %v185
    %v188 = vstv %s53
    %v189 = vmul.f32 %v166, %v188
    %v190 = vmul.f32 %v167, %v188
    %v191 = vadd.f32 %v159, %v189
    %v192 = vadd.f32 %v160, %v190
    %v193 = vrot.slane %v144, 2
    %v194 = vrot.slane %v145, 2
    %vm195 = vcmp.lt.s32.totalorder %v164, 6
    %v196 = vsel %vm195, %v193, %v194
    %v197 = vsel %vm195, %v194, %v193
    %v198 = vstv %s54
    %v199 = vmul.f32 %v196, %v198
    %v200 = vmul.f32 %v197, %v198
    %v201 = vadd.f32 %v171, %v199
    %v202 = vadd.f32 %v172, %v200
    %v203 = vstv %s55
    %v204 = vmul.f32 %v196, %v203
    %v205 = vmul.f32 %v197, %v203
    %v206 = vadd.f32 %v176, %v204
    %v207 = vadd.f32 %v177, %v205
    %v208 = vstv %s56
    %v209 = vmul.f32 %v196, %v208
    %v210 = vmul.f32 %v197, %v208
    %v211 = vadd.f32 %v181, %v209
    %v212 = vadd.f32 %v182, %v210
    %v213 = vstv %s57
    %v214 = vmul.f32 %v196, %v213
    %v215 = vmul.f32 %v197, %v213
    %v216 = vadd.f32 %v186, %v214
    %v217 = vadd.f32 %v187, %v215
    %v218 = vstv %s58
    %v219 = vmul.f32 %v196, %v218
    %v220 = vmul.f32 %v197, %v218
    %v221 = vadd.f32 %v191, %v219
    %v222 = vadd.f32 %v192, %v220
    %v223 = vrot.slane %v144, 3
    %v224 = vrot.slane %v145, 3
    %vm225 = vcmp.lt.s32.totalorder %v164, 5
    %v226 = vsel %vm225, %v223, %v224
    %v227 = vsel %vm225, %v224, %v223
    %v228 = vstv %s59
    %v229 = vmul.f32 %v226, %v228
    %v230 = vmul.f32 %v227, %v228
    %v231 = vadd.f32 %v201, %v229
    %v232 = vadd.f32 %v202, %v230
    %v233 = vstv %s60
    %v234 = vmul.f32 %v226, %v233
    %v235 = vmul.f32 %v227, %v233
    %v236 = vadd.f32 %v206, %v234
    %v237 = vadd.f32 %v207, %v235
    %v238 = vstv %s61
    %v239 = vmul.f32 %v226, %v238
    %v240 = vmul.f32 %v227, %v238
    %v241 = vadd.f32 %v211, %v239
    %v242 = vadd.f32 %v212, %v240
    %v243 = vstv %s62
    %v244 = vmul.f32 %v226, %v243
    %v245 = vmul.f32 %v227, %v243
    %v246 = vadd.f32 %v216, %v244
    %v247 = vadd.f32 %v217, %v245
    %v248 = vstv %s63
    %v249 = vmul.f32 %v226, %v248
    %v250 = vmul.f32 %v227, %v248
    %v251 = vadd.f32 %v221, %v249
    %v252 = vadd.f32 %v222, %v250
    %v253 = vrot.slane %v144, 4
    %v254 = vrot.slane %v145, 4
    %vm255 = vcmp.lt.s32.totalorder %v164, 4
    %v256 = vsel %vm255, %v253, %v254
    %v257 = vsel %vm255, %v254, %v253
    %v258 = vstv %s64
    %v259 = vmul.f32 %v256, %v258
    %v260 = vmul.f32 %v257, %v258
    %v261 = vadd.f32 %v231, %v259
    %v262 = vadd.f32 %v232, %v260
    %v263 = vstv %s65
    %v264 = vmul.f32 %v256, %v263
    %v265 = vmul.f32 %v257, %v263
    %v266 = vadd.f32 %v236, %v264
    %v267 = vadd.f32 %v237, %v265
    %v268 = vstv %s66
    %v269 = vmul.f32 %v256, %v268
    %v270 = vmul.f32 %v257, %v268
    %v271 = vadd.f32 %v241, %v269
    %v272 = vadd.f32 %v242, %v270
    %v273 = vstv %s67
    %v274 = vmul.f32 %v256, %v273
    %v275 = vmul.f32 %v257, %v273
    %v276 = vadd.f32 %v246, %v274
    %v277 = vadd.f32 %v247, %v275
    %v278 = vstv %s68
    %v279 = vmul.f32 %v256, %v278
    %v280 = vmul.f32 %v257, %v278
    %v281 = vadd.f32 %v251, %v279
    %v282 = vadd.f32 %v252, %v280
    %s283 = scalar_lea.vmem [#allocation7], 16
    %v284 = vld [vmem:[%s283] sm:$0xff]
    %v285 = vld [vmem:[%s283 + $0x8] sm:$0xff]
    %v286 = vstv %s69
    %v287 = vmul.f32 %v284, %v286
    %v288 = vmul.f32 %v285, %v286
    %v289 = vadd.f32 %v261, %v287
    %v290 = vadd.f32 %v262, %v288
    %v291 = vstv %s70
    %v292 = vmul.f32 %v284, %v291
    %v293 = vmul.f32 %v285, %v291
    %v294 = vadd.f32 %v266, %v292
    %v295 = vadd.f32 %v267, %v293
    %v296 = vstv %s71
    %v297 = vmul.f32 %v284, %v296
    %v298 = vmul.f32 %v285, %v296
    %v299 = vadd.f32 %v271, %v297
    %v300 = vadd.f32 %v272, %v298
    %v301 = vstv %s72
    %v302 = vmul.f32 %v284, %v301
    %v303 = vmul.f32 %v285, %v301
    %v304 = vadd.f32 %v276, %v302
    %v305 = vadd.f32 %v277, %v303
    %v306 = vstv %s73
    %v307 = vmul.f32 %v284, %v306
    %v308 = vmul.f32 %v285, %v306
    %v309 = vadd.f32 %v281, %v307
    %v310 = vadd.f32 %v282, %v308
    %v311 = vrot.slane %v284, 1
    %v312 = vrot.slane %v285, 1
    %v313 = vsel %vm165, %v311, %v312
    %v314 = vsel %vm165, %v312, %v311
    %v315 = vstv %s74
    %v316 = vmul.f32 %v313, %v315
    %v317 = vmul.f32 %v314, %v315
    %v318 = vadd.f32 %v289, %v316
    %v319 = vadd.f32 %v290, %v317
    %v320 = vstv %s75
    %v321 = vmul.f32 %v313, %v320
    %v322 = vmul.f32 %v314, %v320
    %v323 = vadd.f32 %v294, %v321
    %v324 = vadd.f32 %v295, %v322
    %v325 = vstv %s76
    %v326 = vmul.f32 %v313, %v325
    %v327 = vmul.f32 %v314, %v325
    %v328 = vadd.f32 %v299, %v326
    %v329 = vadd.f32 %v300, %v327
    %v330 = vstv %s77
    %v331 = vmul.f32 %v313, %v330
    %v332 = vmul.f32 %v314, %v330
    %v333 = vadd.f32 %v304, %v331
    %v334 = vadd.f32 %v305, %v332
    %v335 = vstv %s78
    %v336 = vmul.f32 %v313, %v335
    %v337 = vmul.f32 %v314, %v335
    %v338 = vadd.f32 %v309, %v336
    %v339 = vadd.f32 %v310, %v337
    %v340 = vrot.slane %v284, 2
    %v341 = vrot.slane %v285, 2
    %v342 = vsel %vm195, %v340, %v341
    %v343 = vsel %vm195, %v341, %v340
    %v344 = vstv %s79
    %v345 = vmul.f32 %v342, %v344
    %v346 = vmul.f32 %v343, %v344
    %v347 = vadd.f32 %v318, %v345
    %v348 = vadd.f32 %v319, %v346
    %v349 = vstv %s80
    %v350 = vmul.f32 %v342, %v349
    %v351 = vmul.f32 %v343, %v349
    %v352 = vadd.f32 %v323, %v350
    %v353 = vadd.f32 %v324, %v351
    %v354 = vstv %s81
    %v355 = vmul.f32 %v342, %v354
    %v356 = vmul.f32 %v343, %v354
    %v357 = vadd.f32 %v328, %v355
    %v358 = vadd.f32 %v329, %v356
    %v359 = vstv %s82
    %v360 = vmul.f32 %v342, %v359
    %v361 = vmul.f32 %v343, %v359
    %v362 = vadd.f32 %v333, %v360
    %v363 = vadd.f32 %v334, %v361
    %v364 = vstv %s83
    %v365 = vmul.f32 %v342, %v364
    %v366 = vmul.f32 %v343, %v364
    %v367 = vadd.f32 %v338, %v365
    %v368 = vadd.f32 %v339, %v366
    %v369 = vrot.slane %v284, 3
    %v370 = vrot.slane %v285, 3
    %v371 = vsel %vm225, %v369, %v370
    %v372 = vsel %vm225, %v370, %v369
    %v373 = vstv %s84
    %v374 = vmul.f32 %v371, %v373
    %v375 = vmul.f32 %v372, %v373
    %v376 = vadd.f32 %v347, %v374
    %v377 = vadd.f32 %v348, %v375
    %v378 = vstv %s85
    %v379 = vmul.f32 %v371, %v378
    %v380 = vmul.f32 %v372, %v378
    %v381 = vadd.f32 %v352, %v379
    %v382 = vadd.f32 %v353, %v380
    %v383 = vstv %s86
    %v384 = vmul.f32 %v371, %v383
    %v385 = vmul.f32 %v372, %v383
    %v386 = vadd.f32 %v357, %v384
    %v387 = vadd.f32 %v358, %v385
    %v388 = vstv %s87
    %v389 = vmul.f32 %v371, %v388
    %v390 = vmul.f32 %v372, %v388
    %v391 = vadd.f32 %v362, %v389
    %v392 = vadd.f32 %v363, %v390
    %v393 = vstv %s88
    %v394 = vmul.f32 %v371, %v393
    %v395 = vmul.f32 %v372, %v393
    %v396 = vadd.f32 %v367, %v394
    %v397 = vadd.f32 %v368, %v395
    %v398 = vrot.slane %v284, 4
    %v399 = vrot.slane %v285, 4
    %v400 = vsel %vm255, %v398, %v399
    %v401 = vsel %vm255, %v399, %v398
    %v402 = vstv %s89
    %v403 = vmul.f32 %v400, %v402
    %v404 = vmul.f32 %v401, %v402
    %v405 = vadd.f32 %v376, %v403
    %v406 = vadd.f32 %v377, %v404
    %v407 = vstv %s90
    %v408 = vmul.f32 %v400, %v407
    %v409 = vmul.f32 %v401, %v407
    %v410 = vadd.f32 %v381, %v408
    %v411 = vadd.f32 %v382, %v409
    %v412 = vstv %s91
    %v413 = vmul.f32 %v400, %v412
    %v414 = vmul.f32 %v401, %v412
    %v415 = vadd.f32 %v386, %v413
    %v416 = vadd.f32 %v387, %v414
    %v417 = vstv %s92
    %v418 = vmul.f32 %v400, %v417
    %v419 = vmul.f32 %v401, %v417
    %v420 = vadd.f32 %v391, %v418
    %v421 = vadd.f32 %v392, %v419
    %v422 = vstv %s93
    %v423 = vmul.f32 %v400, %v422
    %v424 = vmul.f32 %v401, %v422
    %v425 = vadd.f32 %v396, %v423
    %v426 = vadd.f32 %v397, %v424
    %s427 = scalar_lea.vmem [#allocation7], 32
    %v428 = vld [vmem:[%s427] sm:$0xff]
    %v429 = vld [vmem:[%s427 + $0x8] sm:$0xff]
    %v430 = vstv %s94
    %v431 = vmul.f32 %v428, %v430
    %v432 = vmul.f32 %v429, %v430
    %v433 = vadd.f32 %v405, %v431
    %v434 = vadd.f32 %v406, %v432
    %v435 = vstv %s95
    %v436 = vmul.f32 %v428, %v435
    %v437 = vmul.f32 %v429, %v435
    %v438 = vadd.f32 %v410, %v436
    %v439 = vadd.f32 %v411, %v437
    %v440 = vstv %s96
    %v441 = vmul.f32 %v428, %v440
    %v442 = vmul.f32 %v429, %v440
    %v443 = vadd.f32 %v415, %v441
    %v444 = vadd.f32 %v416, %v442
    %v445 = vstv %s97
    %v446 = vmul.f32 %v428, %v445
    %v447 = vmul.f32 %v429, %v445
    %v448 = vadd.f32 %v420, %v446
    %v449 = vadd.f32 %v421, %v447
    %v450 = vstv %s98
    %v451 = vmul.f32 %v428, %v450
    %v452 = vmul.f32 %v429, %v450
    %v453 = vadd.f32 %v425, %v451
    %v454 = vadd.f32 %v426, %v452
    %v455 = vrot.slane %v428, 1
    %v456 = vrot.slane %v429, 1
    %v457 = vsel %vm165, %v455, %v456
    %v458 = vsel %vm165, %v456, %v455
    %v459 = vstv %s99
    %v460 = vmul.f32 %v457, %v459
    %v461 = vmul.f32 %v458, %v459
    %v462 = vadd.f32 %v433, %v460
    %v463 = vadd.f32 %v434, %v461
    %v464 = vstv %s100
    %v465 = vmul.f32 %v457, %v464
    %v466 = vmul.f32 %v458, %v464
    %v467 = vadd.f32 %v438, %v465
    %v468 = vadd.f32 %v439, %v466
    %v469 = vstv %s101
    %v470 = vmul.f32 %v457, %v469
    %v471 = vmul.f32 %v458, %v469
    %v472 = vadd.f32 %v443, %v470
    %v473 = vadd.f32 %v444, %v471
    %v474 = vstv %s102
    %v475 = vmul.f32 %v457, %v474
    %v476 = vmul.f32 %v458, %v474
    %v477 = vadd.f32 %v448, %v475
    %v478 = vadd.f32 %v449, %v476
    %v479 = vstv %s103
    %v480 = vmul.f32 %v457, %v479
    %v481 = vmul.f32 %v458, %v479
    %v482 = vadd.f32 %v453, %v480
    %v483 = vadd.f32 %v454, %v481
    %v484 = vrot.slane %v428, 2
    %v485 = vrot.slane %v429, 2
    %v486 = vsel %vm195, %v484, %v485
    %v487 = vsel %vm195, %v485, %v484
    %v488 = vstv %s104
    %v489 = vmul.f32 %v486, %v488
    %v490 = vmul.f32 %v487, %v488
    %v491 = vadd.f32 %v462, %v489
    %v492 = vadd.f32 %v463, %v490
    %v493 = vstv %s105
    %v494 = vmul.f32 %v486, %v493
    %v495 = vmul.f32 %v487, %v493
    %v496 = vadd.f32 %v467, %v494
    %v497 = vadd.f32 %v468, %v495
    %v498 = vstv %s106
    %v499 = vmul.f32 %v486, %v498
    %v500 = vmul.f32 %v487, %v498
    %v501 = vadd.f32 %v472, %v499
    %v502 = vadd.f32 %v473, %v500
    %v503 = vstv %s107
    %v504 = vmul.f32 %v486, %v503
    %v505 = vmul.f32 %v487, %v503
    %v506 = vadd.f32 %v477, %v504
    %v507 = vadd.f32 %v478, %v505
    %v508 = vstv %s108
    %v509 = vmul.f32 %v486, %v508
    %v510 = vmul.f32 %v487, %v508
    %v511 = vadd.f32 %v482, %v509
    %v512 = vadd.f32 %v483, %v510
    %v513 = vrot.slane %v428, 3
    %v514 = vrot.slane %v429, 3
    %v515 = vsel %vm225, %v513, %v514
    %v516 = vsel %vm225, %v514, %v513
    %v517 = vstv %s109
    %v518 = vmul.f32 %v515, %v517
    %v519 = vmul.f32 %v516, %v517
    %v520 = vadd.f32 %v491, %v518
    %v521 = vadd.f32 %v492, %v519
    %v522 = vstv %s110
    %v523 = vmul.f32 %v515, %v522
    %v524 = vmul.f32 %v516, %v522
    %v525 = vadd.f32 %v496, %v523
    %v526 = vadd.f32 %v497, %v524
    %v527 = vstv %s111
    %v528 = vmul.f32 %v515, %v527
    %v529 = vmul.f32 %v516, %v527
    %v530 = vadd.f32 %v501, %v528
    %v531 = vadd.f32 %v502, %v529
    %v532 = vstv %s112
    %v533 = vmul.f32 %v515, %v532
    %v534 = vmul.f32 %v516, %v532
    %v535 = vadd.f32 %v506, %v533
    %v536 = vadd.f32 %v507, %v534
    %v537 = vstv %s113
    %v538 = vmul.f32 %v515, %v537
    %v539 = vmul.f32 %v516, %v537
    %v540 = vadd.f32 %v511, %v538
    %v541 = vadd.f32 %v512, %v539
    %v542 = vrot.slane %v428, 4
    %v543 = vrot.slane %v429, 4
    %v544 = vsel %vm255, %v542, %v543
    %v545 = vsel %vm255, %v543, %v542
    %v546 = vstv %s114
    %v547 = vmul.f32 %v544, %v546
    %v548 = vmul.f32 %v545, %v546
    %v549 = vadd.f32 %v520, %v547
    %v550 = vadd.f32 %v521, %v548
    %v551 = vstv %s115
    %v552 = vmul.f32 %v544, %v551
    %v553 = vmul.f32 %v545, %v551
    %v554 = vadd.f32 %v525, %v552
    %v555 = vadd.f32 %v526, %v553
    %v556 = vstv %s116
    %v557 = vmul.f32 %v544, %v556
    %v558 = vmul.f32 %v545, %v556
    %v559 = vadd.f32 %v530, %v557
    %v560 = vadd.f32 %v531, %v558
    %v561 = vstv %s117
    %v562 = vmul.f32 %v544, %v561
    %v563 = vmul.f32 %v545, %v561
    %v564 = vadd.f32 %v535, %v562
    %v565 = vadd.f32 %v536, %v563
    %v566 = vstv %s118
    %v567 = vmul.f32 %v544, %v566
    %v568 = vmul.f32 %v545, %v566
    %v569 = vadd.f32 %v540, %v567
    %v570 = vadd.f32 %v541, %v568
    %s571 = scalar_lea.vmem [#allocation7], 48
    %v572 = vld [vmem:[%s571] sm:$0xff]
    %v573 = vld [vmem:[%s571 + $0x8] sm:$0xff]
    %v574 = vstv %s119
    %v575 = vmul.f32 %v572, %v574
    %v576 = vmul.f32 %v573, %v574
    %v577 = vadd.f32 %v549, %v575
    %v578 = vadd.f32 %v550, %v576
    %v579 = vstv %s120
    %v580 = vmul.f32 %v572, %v579
    %v581 = vmul.f32 %v573, %v579
    %v582 = vadd.f32 %v554, %v580
    %v583 = vadd.f32 %v555, %v581
    %v584 = vstv %s121
    %v585 = vmul.f32 %v572, %v584
    %v586 = vmul.f32 %v573, %v584
    %v587 = vadd.f32 %v559, %v585
    %v588 = vadd.f32 %v560, %v586
    %v589 = vstv %s122
    %v590 = vmul.f32 %v572, %v589
    %v591 = vmul.f32 %v573, %v589
    %v592 = vadd.f32 %v564, %v590
    %v593 = vadd.f32 %v565, %v591
    %v594 = vstv %s123
    %v595 = vmul.f32 %v572, %v594
    %v596 = vmul.f32 %v573, %v594
    %v597 = vadd.f32 %v569, %v595
    %v598 = vadd.f32 %v570, %v596
    %v599 = vrot.slane %v572, 1
    %v600 = vrot.slane %v573, 1
    %v601 = vsel %vm165, %v599, %v600
    %v602 = vsel %vm165, %v600, %v599
    %v603 = vstv %s124
    %v604 = vmul.f32 %v601, %v603
    %v605 = vmul.f32 %v602, %v603
    %v606 = vadd.f32 %v577, %v604
    %v607 = vadd.f32 %v578, %v605
    %v608 = vstv %s125
    %v609 = vmul.f32 %v601, %v608
    %v610 = vmul.f32 %v602, %v608
    %v611 = vadd.f32 %v582, %v609
    %v612 = vadd.f32 %v583, %v610
    %v613 = vstv %s126
    %v614 = vmul.f32 %v601, %v613
    %v615 = vmul.f32 %v602, %v613
    %v616 = vadd.f32 %v587, %v614
    %v617 = vadd.f32 %v588, %v615
    %v618 = vstv %s127
    %v619 = vmul.f32 %v601, %v618
    %v620 = vmul.f32 %v602, %v618
    %v621 = vadd.f32 %v592, %v619
    %v622 = vadd.f32 %v593, %v620
    %v623 = vstv %s128
    %v624 = vmul.f32 %v601, %v623
    %v625 = vmul.f32 %v602, %v623
    %v626 = vadd.f32 %v597, %v624
    %v627 = vadd.f32 %v598, %v625
    %v628 = vrot.slane %v572, 2
    %v629 = vrot.slane %v573, 2
    %v630 = vsel %vm195, %v628, %v629
    %v631 = vsel %vm195, %v629, %v628
    %v632 = vstv %s129
    %v633 = vmul.f32 %v630, %v632
    %v634 = vmul.f32 %v631, %v632
    %v635 = vadd.f32 %v606, %v633
    %v636 = vadd.f32 %v607, %v634
    %v637 = vstv %s130
    %v638 = vmul.f32 %v630, %v637
    %v639 = vmul.f32 %v631, %v637
    %v640 = vadd.f32 %v611, %v638
    %v641 = vadd.f32 %v612, %v639
    %v642 = vstv %s131
    %v643 = vmul.f32 %v630, %v642
    %v644 = vmul.f32 %v631, %v642
    %v645 = vadd.f32 %v616, %v643
    %v646 = vadd.f32 %v617, %v644
    %v647 = vstv %s132
    %v648 = vmul.f32 %v630, %v647
    %v649 = vmul.f32 %v631, %v647
    %v650 = vadd.f32 %v621, %v648
    %v651 = vadd.f32 %v622, %v649
    %v652 = vstv %s133
    %v653 = vmul.f32 %v630, %v652
    %v654 = vmul.f32 %v631, %v652
    %v655 = vadd.f32 %v626, %v653
    %v656 = vadd.f32 %v627, %v654
    %v657 = vrot.slane %v572, 3
    %v658 = vrot.slane %v573, 3
    %v659 = vsel %vm225, %v657, %v658
    %v660 = vsel %vm225, %v658, %v657
    %v661 = vstv %s134
    %v662 = vmul.f32 %v659, %v661
    %v663 = vmul.f32 %v660, %v661
    %v664 = vadd.f32 %v635, %v662
    %v665 = vadd.f32 %v636, %v663
    %v666 = vstv %s135
    %v667 = vmul.f32 %v659, %v666
    %v668 = vmul.f32 %v660, %v666
    %v669 = vadd.f32 %v640, %v667
    %v670 = vadd.f32 %v641, %v668
    %v671 = vstv %s136
    %v672 = vmul.f32 %v659, %v671
    %v673 = vmul.f32 %v660, %v671
    %v674 = vadd.f32 %v645, %v672
    %v675 = vadd.f32 %v646, %v673
    %v676 = vstv %s137
    %v677 = vmul.f32 %v659, %v676
    %v678 = vmul.f32 %v660, %v676
    %v679 = vadd.f32 %v650, %v677
    %v680 = vadd.f32 %v651, %v678
    %v681 = vstv %s138
    %v682 = vmul.f32 %v659, %v681
    %v683 = vmul.f32 %v660, %v681
    %v684 = vadd.f32 %v655, %v682
    %v685 = vadd.f32 %v656, %v683
    %v686 = vrot.slane %v572, 4
    %v687 = vrot.slane %v573, 4
    %v688 = vsel %vm255, %v686, %v687
    %v689 = vsel %vm255, %v687, %v686
    %v690 = vstv %s139
    %v691 = vmul.f32 %v688, %v690
    %v692 = vmul.f32 %v689, %v690
    %v693 = vadd.f32 %v664, %v691
    %v694 = vadd.f32 %v665, %v692
    %v695 = vstv %s140
    %v696 = vmul.f32 %v688, %v695
    %v697 = vmul.f32 %v689, %v695
    %v698 = vadd.f32 %v669, %v696
    %v699 = vadd.f32 %v670, %v697
    %v700 = vstv %s141
    %v701 = vmul.f32 %v688, %v700
    %v702 = vmul.f32 %v689, %v700
    %v703 = vadd.f32 %v674, %v701
    %v704 = vadd.f32 %v675, %v702
    %v705 = vstv %s142
    %v706 = vmul.f32 %v688, %v705
    %v707 = vmul.f32 %v689, %v705
    %v708 = vadd.f32 %v679, %v706
    %v709 = vadd.f32 %v680, %v707
    %v710 = vstv %s143
    %v711 = vmul.f32 %v688, %v710
    %v712 = vmul.f32 %v689, %v710
    %v713 = vadd.f32 %v684, %v711
    %v714 = vadd.f32 %v685, %v712
    %v715 = vstv %s43
    %v716 = vadd.f32 %v693, %v715
    %v717 = vadd.f32 %v694, %v715
    %718 = vrot.lane.b32.xlu0 %v698, 127
    %v719 = vpop.permute.xlu0 %718
    %720 = vrot.lane.b32.xlu0 %v699, 127
    %v721 = vpop.permute.xlu0 %720
    %v722 = vadd.f32 %v716, %v719
    %v723 = vadd.f32 %v717, %v721
    %724 = vrot.lane.b32.xlu0 %v703, 126
    %v725 = vpop.permute.xlu0 %724
    %726 = vrot.lane.b32.xlu0 %v704, 126
    %v727 = vpop.permute.xlu0 %726
    %v728 = vadd.f32 %v722, %v725
    %v729 = vadd.f32 %v723, %v727
    %730 = vrot.lane.b32.xlu0 %v708, 125
    %v731 = vpop.permute.xlu0 %730
    %732 = vrot.lane.b32.xlu0 %v709, 125
    %v733 = vpop.permute.xlu0 %732
    %v734 = vadd.f32 %v728, %v731
    %v735 = vadd.f32 %v729, %v733
    %736 = vrot.lane.b32.xlu0 %v713, 124
    %v737 = vpop.permute.xlu0 %736
    %738 = vrot.lane.b32.xlu0 %v714, 124
    %v739 = vpop.permute.xlu0 %738
    %v740 = vadd.f32 %v734, %v737
    %v741 = vadd.f32 %v735, %v739
    %742 = vst [vmem:[#allocation8] sm:$0xff] %v740
    %743 = vst [vmem:[#allocation8 + $0x8] sm:$0xff] %v741
    // Predicated region
    $region22: #{tpu_custom_call.1} parent=1 // pred_check
      _
    $region23: #{tpu_custom_call.1} parent=1 // pred_check_branch
      %745 = sbr.rel (0) target = $region25
    $region24: #{tpu_custom_call.1} parent=1 // pred_region
      %s747 = ssub.s32 256, 256
      %748 = vsyncadd [#allocation5], %s747
      %s749 = sshll.u32 [#allocation8], 4
      %s750 = int_to_ptr.vmem [resolvable:$true] %s749
      %755 = dma.vmem_to_hbm [thread:$0]  %s750, 256, %s3, [#allocation5], 128, 128, 8
    $region25: #{tpu_custom_call.1} parent=1 // pred_fallthru
      _
    // Predicated region
    $region26: #{tpu_custom_call.1} parent=1 // pred_check
      _
    $region27: #{tpu_custom_call.1} parent=1 // pred_check_branch
      %757 = sbr.rel (0) target = $region29
    $region28: #{tpu_custom_call.1} parent=1 // pred_region
      %758 = dma.done [#allocation5], 256
    $region29: #{tpu_custom_call.1} parent=1 // pred_fallthru
      _
    %759 = vsyncpa [#allocation4], 1
    %760 = vsyncpa [#allocation5], 1
    %761 = vsyncpa [#allocation6], 1

</llo_original>
